<compile_context>
chip_gen: v6e
topology: v6e:2x2x1
jax: 0.10.0
libtpu: 0.0.40
codegen_flags: <defaults>
</compile_context>

<pallas_src>
import math

import jax
import jax.numpy as jnp
from jax.experimental import pallas as pl
from jax.experimental.pallas import tpu as pltpu


# ------------------------------ kernel body -------------------------------- #

def _center_kernel(x_ref, o_ref):
    """Block (1, C, TT): subtract the per-(b, t) mean over the channel axis."""
    x = x_ref[...].astype(jnp.float32)
    mean = jnp.mean(x, axis=1, keepdims=True)       # reduce dim=1 (sublane axis)
    o_ref[...] = (x - mean).astype(o_ref.dtype)


# ----------------------------- pallas wrapper ------------------------------ #

def center(x, *, t_tile=2048):
    """x - x.mean(dim=1, keepdim=True) for x of rank >= 2 (any trailing dims).

    Trailing dims (if any) are flattened onto the lane axis; dim=1 stays on
    the sublane axis so the reduction is a cheap XLU sublane reduce.
    """
    orig_shape = x.shape
    B, C = orig_shape[0], orig_shape[1]
    T = math.prod(orig_shape[2:]) if len(orig_shape) > 2 else 1
    x3 = x.reshape(B, C, T)

    # Lane-dense T tiles (multiples of 128) when possible; otherwise take the
    # full trailing axis (block dim == array dim is always legal).
    if T % 128 == 0:
        tt = min(T, t_tile)
        tt = max(128, (tt // 128) * 128)
    else:
        tt = T

    grid = (B, pl.cdiv(T, tt))

    out = pl.pallas_call(
        _center_kernel,
        out_shape=jax.ShapeDtypeStruct((B, C, T), x.dtype),
        grid=grid,
        in_specs=[pl.BlockSpec((1, C, tt), lambda b, t: (b, 0, t))],
        out_specs=pl.BlockSpec((1, C, tt), lambda b, t: (b, 0, t)),
        compiler_params=pltpu.CompilerParams(
            # Both axes independent -> megacore sharding on v7x; near-neutral
            # (but harmless) on single-TC v5e/v6e.
            dimension_semantics=("parallel", "parallel"),
            # Explicit budget so tiles stay safe on v7x's 64 MiB VMEM.
            vmem_limit_bytes=64 * 1024 * 1024,
        ),
    )(x3)
    return out.reshape(orig_shape)


# --------------------------------- main ------------------------------------ #

if __name__ == "__main__":
    key = jax.random.PRNGKey(0)
    # Small shape consistent with the encoder this module lives in:
    # (batch, channels, seq) = (2, 32, 128); seq is lane-dense (multiple of 128).
    B, C, T = 2, 32, 128
    x = jax.random.normal(key, (B, C, T), jnp.float32)

    out = jax.block_until_ready(center(x))

    ref = x - jnp.mean(x, axis=1, keepdims=True)
    assert out.shape == x.shape
    assert out.dtype == x.dtype
    assert bool(jnp.allclose(out, ref, atol=1e-5, rtol=1e-5))
    print("KERNEL_OK")
</pallas_src>

<mosaic_0001>
module attributes {stable_mosaic.version = 11 : i64} {
  func.func @_center_kernel(%arg0: i32, %arg1: i32, %arg2: memref<1x32x128xf32, #tpu.memory_space<vmem>>, %arg3: memref<1x32x128xf32, #tpu.memory_space<vmem>>) attributes {dimension_semantics = [#tpu.dimension_semantics<parallel>, #tpu.dimension_semantics<parallel>], iteration_bounds = array<i64: 2, 1>, scalar_prefetch = 0 : i64, scratch_operands = 0 : i64, tpu.core_type = #tpu.core_type<tc>, window_params = [{transform_indices = @transform_0, window_bounds = array<i64: 1, 32, 128>}, {transform_indices = @transform_1, window_bounds = array<i64: 1, 32, 128>}]} {
    %c0 = arith.constant 0 : index
    %c0_0 = arith.constant 0 : index
    %c0_1 = arith.constant 0 : index
    %0 = vector.load %arg2[%c0, %c0_0, %c0_1] : memref<1x32x128xf32, #tpu.memory_space<vmem>>, vector<1x32x128xf32>
    %cst = arith.constant dense<0.000000e+00> : vector<1x128xf32>
    %1 = vector.multi_reduction <add>, %0, %cst [1] : vector<1x32x128xf32> to vector<1x128xf32>
    %2 = vector.shape_cast %1 : vector<1x128xf32> to vector<1x1x128xf32>
    %cst_2 = arith.constant 3.200000e+01 : f32
    %3 = vector.broadcast %cst_2 : f32 to vector<1x1x128xf32>
    %4 = arith.divf %2, %3 : vector<1x1x128xf32>
    %5 = vector.broadcast %4 : vector<1x1x128xf32> to vector<1x32x128xf32>
    %6 = arith.subf %0, %5 : vector<1x32x128xf32>
    %c0_3 = arith.constant 0 : index
    %c0_4 = arith.constant 0 : index
    %c0_5 = arith.constant 0 : index
    %7 = vector.load %arg3[%c0_3, %c0_4, %c0_5] : memref<1x32x128xf32, #tpu.memory_space<vmem>>, vector<1x32x128xf32>
    tpu.vector_store %arg3[%c0_3, %c0_4, %c0_5], %6 {strides = array<i32>} : memref<1x32x128xf32, #tpu.memory_space<vmem>>, vector<1x32x128xf32>,
    return
  }
  func.func @transform_0(%arg0: i32, %arg1: i32) -> (i32, i32, i32) {
    %c0_i32 = arith.constant 0 : i32
    %c0_i32_0 = arith.constant 0 : i32
    return %arg0, %c0_i32, %arg1 : i32, i32, i32
  }
  func.func @transform_1(%arg0: i32, %arg1: i32) -> (i32, i32, i32) {
    %c0_i32 = arith.constant 0 : i32
    %c0_i32_0 = arith.constant 0 : i32
    return %arg0, %c0_i32, %arg1 : i32, i32, i32
  }
}

</mosaic_0001>

<llo_original>
// kernel: tpu_custom_call.1
$region0: #{tpu_custom_call.1}
  #allocation0 [shape = 'u32[]', space=smem, size = 0x4, offset = 0x4, fixed_abs, tag = 'smem constant byte address 0x4 - core index']
  #allocation1 [shape = 'u32[144,128]{1,0:T(1,128)}', space=vmem, size = 0x12000, scoped, tag = 'internal scratch']
  %s0 = inlined_call_operand.hbm [shape: f32[2,32,128], index: 0, kind: input, shape index: {}]
  %s1 = inlined_call_operand.hbm [shape: f32[2,32,128], index: 1, kind: output, shape index: {}]
  %s2 = sld [smem:[#allocation0]]
  $region41: #{tpu_custom_call.1} parent=0
    _
  %s4 = ssub.s32 1, %s2
  %s5 = scalar_select 0, %s4, %s2
  $region1: #{tpu_custom_call.1} parent=0
    #allocation2 [shape = 'u8[32768]{0}', space=vmem, size = 0x8000, scoped, tag = 'input window, operand 0']
    #allocation3 [shape = 's32[2]{0}', space=sflag, size = 0x8, scoped, tag = 'scoped memory for tpu_custom_call.1']
    #allocation4 [shape = 's32[2]{0}', space=sflag, size = 0x8, scoped, tag = 'scoped memory for tpu_custom_call.1']
    #allocation5 [shape = 'u8[32768]{0}', space=vmem, size = 0x8000, scoped, tag = 'output window, operand 0']
    %6 = vsyncpa [#allocation3], 0
    %s7 = scalar_lea.sflag [#allocation3], 1
    %8 = vsyncpa %s7, 0
    %9 = vsyncpa [#allocation4], 0
    %s10 = scalar_lea.sflag [#allocation4], 1
    %11 = vsyncpa %s10, 0
    loop: start=0, step=1, limit=4
    $region2: #{tpu_custom_call.1} parent=1 // loop_pre_header
      _
    $region3: #{tpu_custom_call.1} parent=1 // loop_header
      %s13 = sphi 0, %s17
      %p14 = scmp.ge.s32.totalorder %s13, 4
      %s20 = sphi 0, %s32
      %s21 = sphi 0, %s28
      %s22 = sphi 0, %s20
      %s23 = sphi 0, %s21
      %s24 = sphi 0, %s22
      %s25 = sphi 0, %s23
      %s37 = sphi 0, %s39
      %s40 = sphi 0, %s37
      %s41 = sphi 0, %s40
      %s57 = sphi 0, %s41
      %s65 = sphi 0, %s67
      %s68 = sphi 0, %s65
      %s69 = sphi 0, %s68
      %s85 = sphi 0, %s69
    $region4: #{tpu_custom_call.1} parent=1 // loop_header_branch
      %16 = sbr.rel (%p14) target = $region8
    $region5: #{tpu_custom_call.1} parent=1 // loop_body
      %s18 = ssub.s32 %s13, 1
      %s19 = ssub.s32 %s13, 2
      %s26 = sadd.s32 1, %s21
      %p27 = scmp.ge.s32.totalorder %s26, 1
      %s28 = scalar_select %p27, 0, %s26
      %s29 = sadd.s32 1, %s20
      %s30 = scalar_select %p27, %s29, %s20
      %p31 = scmp.ge.s32.totalorder %s30, 2
      %s32 = scalar_select %p31, 0, %s30
      %s33 = ssub.s32 %s20, %s32
      %s34 = ssub.s32 %s21, %s28
      %s35 = sor.u32 %s33, %s34
      %p36 = scmp.eq.s32.totalorder %s35, 0
      %s38 = sadd.s32 %s37, 1
      %s39 = scalar_select %p36, %s37, %s38
      %p42 = pneg %p36
      %p43 = scmp.eq.s32.totalorder %s13, 1
      %p44 = por %p42, %p43
      %p45 = scmp.ne.s32.totalorder %s37, %s40
      %p46 = scmp.eq.s32.totalorder %s13, 0
      %p47 = por %p45, %p46
      %p48 = scmp.ne.s32.totalorder %s37, %s40
      %p49 = scmp.eq.s32.totalorder %s18, 1
      %p50 = por %p48, %p49
      %p51 = scmp.ne.s32.totalorder %s40, %s41
      %p52 = scmp.eq.s32.totalorder %s18, 0
      %p53 = por %p51, %p52
      %p54 = scmp.ne.s32.totalorder %s40, %s41
      %p55 = scmp.eq.s32.totalorder %s19, 1
      %p56 = por %p54, %p55
      %p58 = scmp.ne.s32.totalorder %s41, %s57
      %p59 = scmp.eq.s32.totalorder %s19, 0
      %p60 = por %p58, %p59
      %s61 = ssub.s32 %s20, %s32
      %s62 = ssub.s32 %s21, %s28
      %s63 = sor.u32 %s61, %s62
      %p64 = scmp.eq.s32.totalorder %s63, 0
      %s66 = sadd.s32 %s65, 1
      %s67 = scalar_select %p64, %s65, %s66
      %p70 = pneg %p64
      %p71 = scmp.eq.s32.totalorder %s13, 1
      %p72 = por %p70, %p71
      %p73 = scmp.ne.s32.totalorder %s65, %s68
      %p74 = scmp.eq.s32.totalorder %s13, 0
      %p75 = por %p73, %p74
      %p76 = scmp.ne.s32.totalorder %s65, %s68
      %p77 = scmp.eq.s32.totalorder %s18, 1
      %p78 = por %p76, %p77
      %p79 = scmp.ne.s32.totalorder %s68, %s69
      %p80 = scmp.eq.s32.totalorder %s18, 0
      %p81 = por %p79, %p80
      %p82 = scmp.ne.s32.totalorder %s68, %s69
      %p83 = scmp.eq.s32.totalorder %s19, 1
      %p84 = por %p82, %p83
      %p86 = scmp.ne.s32.totalorder %s69, %s85
      %p87 = scmp.eq.s32.totalorder %s19, 0
      %p88 = por %p86, %p87
      %p89 = scmp.le.s32.totalorder 1, %s13
      %p90 = scmp.lt.s32.totalorder %s13, 3
      %p91 = pnand %p89, %p90
      %p92 = pneg %p91
      // Predicated region
      $region9: #{tpu_custom_call.1} parent=5 // pred_check
        _
      $region10: #{tpu_custom_call.1} parent=5 // pred_check_branch
        %94 = sbr.rel (%p91) target = $region12
      $region11: #{tpu_custom_call.1} parent=5 // pred_region
        %s95 = ssub.s32 %s13, 1
      $region12: #{tpu_custom_call.1} parent=5 // pred_fallthru
        _
      %p96 = scmp.lt.s32.totalorder %s13, 2
      // Predicated region
      $region13: #{tpu_custom_call.1} parent=5 // pred_check
        %p97 = pneg %p96
      $region14: #{tpu_custom_call.1} parent=5 // pred_check_branch
        %99 = sbr.rel (%p97) target = $region16
      $region15: #{tpu_custom_call.1} parent=5 // pred_region
        // Predicated region
        $region17: #{tpu_custom_call.1} parent=15 // pred_check
          %p100 = pneg %p47
        $region18: #{tpu_custom_call.1} parent=15 // pred_check_branch
          %102 = sbr.rel (%p100) target = $region20
        $region19: #{tpu_custom_call.1} parent=15 // pred_region
          %s103 = sand.u32 %s37, 1
          %s104 = scalar_lea.sflag [#allocation3], %s103
          %s105 = sand.u32 %s37, 1
          %s106 = smul.addr %s105, 32
          %s107 = scalar_lea.vmem [#allocation2], %s106
          %s109 = ssub.s32 512, 512
          %110 = vsyncadd %s104, %s109
          %s111 = smul.addr %s20, 4
          %s112 = sadd.s32 %s21, %s111
          %s113 = smul.addr %s112, 128
          %s114 = scalar_lea.hbm %s0, %s113
          %s115 = sshll.u32 %s107, 4
          %s116 = int_to_ptr.vmem [resolvable:$true] %s115
          %121 = dma.hbm_to_vmem [thread:$0]  %s114, 512, %s116, %s104, 128, 128, 8
        $region20: #{tpu_custom_call.1} parent=15 // pred_fallthru
          _
      $region16: #{tpu_custom_call.1} parent=5 // pred_fallthru
        _
      %p122 = scmp.le.s32.totalorder 1, %s13
      %p123 = scmp.lt.s32.totalorder %s13, 3
      %p124 = pnand %p122, %p123
      %p125 = pneg %p124
      // Predicated region
      $region21: #{tpu_custom_call.1} parent=5 // pred_check
        _
      $region22: #{tpu_custom_call.1} parent=5 // pred_check_branch
        %127 = sbr.rel (%p124) target = $region24
      $region23: #{tpu_custom_call.1} parent=5 // pred_region
        %s128 = ssub.s32 %s13, 1
        %s129 = sand.u32 %s40, 1
        %s130 = scalar_lea.sflag [#allocation3], %s129
        %s131 = sand.u32 %s40, 1
        %s132 = smul.addr %s131, 32
        %s133 = scalar_lea.vmem [#allocation2], %s132
        // Predicated region
        $region25: #{tpu_custom_call.1} parent=23 // pred_check
          %p134 = pneg %p53
        $region26: #{tpu_custom_call.1} parent=23 // pred_check_branch
          %136 = sbr.rel (%p134) target = $region28
        $region27: #{tpu_custom_call.1} parent=23 // pred_region
          %137 = dma.done %s130, 512
        $region28: #{tpu_custom_call.1} parent=23 // pred_fallthru
          _
        %s138 = sand.u32 %s40, 1
        %s139 = scalar_lea.sflag [#allocation3], %s138
        %s140 = sand.u32 %s40, 1
        %s141 = smul.addr %s140, 32
        %s142 = scalar_lea.vmem [#allocation2], %s141
        %p143 = pneg %p53
        %p144 = pneg %p50
        %p145 = pneg %p81
        %p146 = pneg %p78
        %s147 = sand.u32 %s68, 1
        %s148 = scalar_lea.sflag [#allocation4], %s147
        %s149 = sand.u32 %s68, 1
        %s150 = smul.addr %s149, 32
        %s151 = scalar_lea.vmem [#allocation5], %s150
        %v152 = vld [vmem:[%s133] sm:$0xff]
        %v153 = vld [vmem:[%s133 + $0x8] sm:$0xff]
        %v154 = vld [vmem:[%s133 + $0x10] sm:$0xff]
        %v155 = vld [vmem:[%s133 + $0x18] sm:$0xff]
        %v156 = vadd.f32 %v152, %v153
        %v157 = vadd.f32 %v156, %v154
        %v158 = vadd.f32 %v157, %v155
        %v159 = vrot.slane %v158, 4
        %v160 = vadd.f32 %v158, %v159
        %v161 = vrot.slane %v160, 2
        %v162 = vadd.f32 %v160, %v161
        %v163 = vrot.slane %v162, 1
        %v164 = vadd.f32 %v162, %v163
        %v165 = vrcp.pop 32.0
        %v166 = vmul.f32 %v164, %v165
        %v167 = vsub.f32 %v152, %v166
        %v168 = vsub.f32 %v153, %v166
        %v169 = vsub.f32 %v154, %v166
        %v170 = vsub.f32 %v155, %v166
        %171 = vst [vmem:[%s151] sm:$0xff] %v167
        %172 = vst [vmem:[%s151 + $0x8] sm:$0xff] %v168
        %173 = vst [vmem:[%s151 + $0x10] sm:$0xff] %v169
        %174 = vst [vmem:[%s151 + $0x18] sm:$0xff] %v170
        %s175 = sand.u32 %s68, 1
        %s176 = scalar_lea.sflag [#allocation4], %s175
        %s177 = sand.u32 %s68, 1
        %s178 = smul.addr %s177, 32
        %s179 = scalar_lea.vmem [#allocation5], %s178
        // Predicated region
        $region29: #{tpu_custom_call.1} parent=23 // pred_check
          %p180 = pneg %p78
        $region30: #{tpu_custom_call.1} parent=23 // pred_check_branch
          %182 = sbr.rel (%p180) target = $region32
        $region31: #{tpu_custom_call.1} parent=23 // pred_region
          %s184 = ssub.s32 512, 512
          %185 = vsyncadd %s176, %s184
          %s186 = smul.addr %s22, 4
          %s187 = sadd.s32 %s23, %s186
          %s188 = smul.addr %s187, 128
          %s189 = scalar_lea.hbm %s1, %s188
          %s190 = sshll.u32 %s179, 4
          %s191 = int_to_ptr.vmem [resolvable:$true] %s190
          %196 = dma.vmem_to_hbm [thread:$0]  %s191, 512, %s189, %s176, 128, 128, 8
        $region32: #{tpu_custom_call.1} parent=23 // pred_fallthru
          _
      $region24: #{tpu_custom_call.1} parent=5 // pred_fallthru
        _
      %p197 = scmp.le.s32.totalorder 2, %s13
      // Predicated region
      $region33: #{tpu_custom_call.1} parent=5 // pred_check
        %p198 = pneg %p197
      $region34: #{tpu_custom_call.1} parent=5 // pred_check_branch
        %200 = sbr.rel (%p198) target = $region36
      $region35: #{tpu_custom_call.1} parent=5 // pred_region
        %s201 = ssub.s32 %s13, 2
        // Predicated region
        $region37: #{tpu_custom_call.1} parent=35 // pred_check
          %p202 = pneg %p84
        $region38: #{tpu_custom_call.1} parent=35 // pred_check_branch
          %204 = sbr.rel (%p202) target = $region40
        $region39: #{tpu_custom_call.1} parent=35 // pred_region
          %s205 = sand.u32 %s69, 1
          %s206 = scalar_lea.sflag [#allocation4], %s205
          %s207 = sand.u32 %s69, 1
          %s208 = smul.addr %s207, 32
          %s209 = scalar_lea.vmem [#allocation5], %s208
          %210 = dma.done %s206, 512
        $region40: #{tpu_custom_call.1} parent=35 // pred_fallthru
          _
      $region36: #{tpu_custom_call.1} parent=5 // pred_fallthru
        _
    $region6: #{tpu_custom_call.1} parent=1 // loop_footer
      %s17 = sadd.s32 1, %s13
    $region7: #{tpu_custom_call.1} parent=1 // loop_footer_branch
      %12 = sbr.rel target = $region3
    $region8: #{tpu_custom_call.1} parent=1 // loop_exit
      _
    %211 = vsyncpa [#allocation3], 1
    %s212 = scalar_lea.sflag [#allocation3], 1
    %213 = vsyncpa %s212, 1
    %214 = vsyncpa [#allocation4], 1
    %s215 = scalar_lea.sflag [#allocation4], 1
    %216 = vsyncpa %s215, 1

</llo_original>
